<compile_context>
chip_gen: v7x
topology: tpu7x:2x2x1
jax: 0.10.0
libtpu: 0.0.40
codegen_flags: <defaults>
</compile_context>

<pallas_src>
import functools

import jax
import jax.numpy as jnp
from jax import lax
from jax.experimental import pallas as pl
from jax.experimental.pallas import tpu as pltpu

# ----------------------------- configuration -----------------------------
PATCH = 8                  # patch size of the synthetic image encoder
D_VIS = 32                 # visual_feature_size (synthetic stand-in for 768)
D_TXT = 32                 # textual_feature_size
TOP_N_BBOX = 4
HARD_IMG_FEATURE_SIZE = 2  # tokens per crop (crops are PATCH x 2*PATCH)
LN_EPS = 1e-5
LANE = 128                 # lane width; feature dim padded up to a multiple
ROW_ALIGN = 16             # bf16 sublane packing: one bf16 vreg is [16, 128]
TM_MAX = 512               # row-tile cap (~85% HBM roofline, VMEM-safe on v7x)


def _round_up(x, m):
    return ((x + m - 1) // m) * m


# ------------------------------ Pallas kernel -----------------------------
def _patch_embed_ln_kernel(x_ref, w_ref, p_ref, m_ref, o_ref, *, d_true):
    """Fused patch-embed matmul + bias + LayerNorm + validity mask.

    Per grid step:
      x: (tm, K) bf16    w: (K, D_pad) bf16
      p: (8, D_pad) f32  rows 0/1/2 = bias / gamma / beta (padded cols zero)
      m: (tm, 1) f32     row-validity mask (0 for padded / missing crop rows)
      o: (tm, D_pad)     bf16 (or f32)
    """
    y = jnp.dot(x_ref[...], w_ref[...], preferred_element_type=jnp.float32)
    p = p_ref[...]
    y = y + p[0:1, :]                                    # bias
    inv_d = 1.0 / d_true
    mean = jnp.sum(y, axis=-1, keepdims=True) * inv_d    # one-pass stats
    var = jnp.sum(y * y, axis=-1, keepdims=True) * inv_d - mean * mean
    var = jnp.maximum(var, 0.0)                          # guard f32 cancellation
    y_hat = (y - mean) * lax.rsqrt(var + LN_EPS)
    out = (y_hat * p[1:2, :] + p[2:3, :]) * m_ref[...]   # LN affine + crop mask
    o_ref[...] = out.astype(o_ref.dtype)


# ------------------------- patch extraction (wrapper) -----------------------
def _extract_patches(x_nchw):
    """(N, C, H, W) -> (N, gh*gw, C*P*P) patch matrix in Conv2d patch order."""
    N, C, H, W = x_nchw.shape
    P = PATCH
    gh, gw = H // P, W // P
    x = x_nchw.reshape(N, C, gh, P, gw, P)
    x = jnp.transpose(x, (0, 2, 4, 1, 3, 5))          # (N, gh, gw, C, P, P)
    return x.reshape(N, gh * gw, C * P * P)


# ------------------------------ parameters ---------------------------------
def init_params(key, in_ch):
    K = in_ch * PATCH * PATCH
    k_w, k_b, k_pw, _ = jax.random.split(key, 4)
    return {
        # patch embedding (Conv2d(in_ch, D, PATCH, stride=PATCH) as matmul)
        "w": jax.random.normal(k_w, (K, D_VIS), jnp.float32) * 0.02,
        "b": jax.random.normal(k_b, (1, D_VIS), jnp.float32) * 0.02,
        # LayerNorm
        "gamma": jnp.ones((1, D_VIS), jnp.float32),
        "beta": jnp.zeros((1, D_VIS), jnp.float32),
        # object_projection ('linearLn') -- created in __init__ of the
        # reference module but NOT used in forward().
        "proj_w": jax.random.normal(k_pw, (D_VIS, D_TXT), jnp.float32) * 0.02,
        "proj_b": jnp.zeros((D_TXT,), jnp.float32),
        "proj_ln_g": jnp.ones((D_TXT,), jnp.float32),
        "proj_ln_b": jnp.zeros((D_TXT,), jnp.float32),
    }


def pack_encoder_params(params):
    """Pad / pack encoder params ONCE (lane-dense, bf16 weights, fused b/g/beta)."""
    K, D = params["w"].shape
    D_pad = _round_up(D, LANE)
    w = jnp.pad(params["w"], ((0, 0), (0, D_pad - D))).astype(jnp.bfloat16)
    fused = jnp.zeros((8, D_pad), jnp.float32)
    fused = fused.at[0, :D].set(params["b"].reshape(-1))
    fused = fused.at[1, :D].set(params["gamma"].reshape(-1))
    fused = fused.at[2, :D].set(params["beta"].reshape(-1))
    return {"w": w, "fused": fused, "d": D, "k": K}


# ------------------------ ImgObjEncoder.forward ----------------------------
def img_obj_encoder_forward(batch, batch_image_crops, packed,
                            top_n_bbox=TOP_N_BBOX, out_dtype=jnp.bfloat16):
    B, C, H, W = batch.shape
    P = PATCH
    s_img = (H // P) * (W // P)
    fs = HARD_IMG_FEATURE_SIZE           # tokens per crop (crops are P x 2P)
    s_crop = top_n_bbox * fs
    s_total = s_img + s_crop
    K = C * P * P
    D = packed["d"]
    D_pad = packed["w"].shape[1]

    # ---- build tokens already in the FINAL per-batch layout ----------------
    # [image tokens | crop tokens (LEFT zero-padded, reference order)].
    # bf16 cast happens before patch extraction so the transpose/concat moves
    # half the bytes and fuses into one XLA copy of the input.
    img_rows = _extract_patches(batch.astype(jnp.bfloat16))         # (B, s_img, K)

    crop_rows, crop_mask = [], []
    for b in range(B):
        crops = batch_image_crops[b]
        if crops is None or crops.size == 0:
            crop_rows.append(jnp.zeros((s_crop, K), jnp.bfloat16))
            crop_mask.append(jnp.zeros((s_crop,), jnp.float32))
        else:
            n = crops.shape[0]
            # Reference module never truncates; mirror its assumption.
            assert n <= top_n_bbox, "more crops than top_n_bbox is unsupported"
            rows = _extract_patches(crops.astype(jnp.bfloat16)).reshape(n * fs, K)
            n_pad = (top_n_bbox - n) * fs
            crop_rows.append(jnp.concatenate(
                [jnp.zeros((n_pad, K), jnp.bfloat16), rows], axis=0))
            crop_mask.append(jnp.concatenate(
                [jnp.zeros((n_pad,), jnp.float32),
                 jnp.ones((n * fs,), jnp.float32)], axis=0))
    crop_rows = jnp.stack(crop_rows, axis=0)                         # (B, s_crop, K)
    crop_mask = jnp.stack(crop_mask, axis=0)                         # (B, s_crop)

    x_tok = jnp.concatenate([img_rows, crop_rows], axis=1)           # (B, s_total, K)
    mask = jnp.concatenate(
        [jnp.ones((B, s_img), jnp.float32), crop_mask], axis=1)      # (B, s_total)

    # ---- ragged-friendly row tiling (no fixed-256 padding) -----------------
    tm = min(TM_MAX, _round_up(s_total, ROW_ALIGN))
    s_pad = _round_up(s_total, tm)
    if s_pad != s_total:
        x_tok = jnp.pad(x_tok, ((0, 0), (0, s_pad - s_total), (0, 0)))
        mask = jnp.pad(mask, ((0, 0), (0, s_pad - s_total)))
    mask = mask[:, :, None]                                          # (B, s_pad, 1)

    kernel = functools.partial(_patch_embed_ln_kernel, d_true=float(D))
    out = pl.pallas_call(
        kernel,
        out_shape=jax.ShapeDtypeStruct((B, s_pad, D_pad), out_dtype),
        grid_spec=pl.GridSpec(
            grid=(B, s_pad // tm),      # >= 2 steps whenever B >= 2 (v7x megacore)
            in_specs=[
                pl.BlockSpec((None, tm, K), lambda b, t: (b, t, 0)),   # tokens
                # Grid-invariant operands: block index never changes, so the
                # pipeline keeps the resident copy instead of re-DMA-ing.
                pl.BlockSpec((K, D_pad), lambda b, t: (0, 0)),         # weights
                pl.BlockSpec((8, D_pad), lambda b, t: (0, 0)),         # b/gamma/beta
                pl.BlockSpec((None, tm, 1), lambda b, t: (b, t, 0)),   # row mask
            ],
            out_specs=pl.BlockSpec((None, tm, D_pad), lambda b, t: (b, t, 0)),
        ),
        compiler_params=pltpu.CompilerParams(
            dimension_semantics=("parallel", "parallel")),
    )(x_tok, packed["w"], packed["fused"], mask)

    # Only the synthetic-size padding is trimmed; at real sizes (D = 768 is a
    # multiple of 128 and s_total a multiple of 16) this is a no-op.
    if (s_pad, D_pad) != (s_total, D):
        out = out[:, :s_total, :D]
    return out


# ------------------------------ pure-JAX ref --------------------------------
def _encoder_ref(x_nchw, params):
    x = _extract_patches(x_nchw)                       # (N, T, K) f32
    y = x @ params["w"] + params["b"]
    mean = jnp.mean(y, axis=-1, keepdims=True)
    var = jnp.mean((y - mean) ** 2, axis=-1, keepdims=True)
    return (y - mean) / jnp.sqrt(var + LN_EPS) * params["gamma"] + params["beta"]


# ---------------------------------- main ------------------------------------
if __name__ == "__main__":
    key = jax.random.PRNGKey(0)
    k_params, k_batch, k_crops = jax.random.split(key, 3)

    B, C, H, W = 2, 4, 16, 16
    params = init_params(k_params, C)
    packed = pack_encoder_params(params)

    # Full images: (B, C, H, W) NCHW, like PyTorch.
    batch = jax.random.normal(k_batch, (B, C, H, W), jnp.float32)

    # Per-batch bbox crops.  Crops are PATCH x 2*PATCH so each crop yields
    # HARD_IMG_FEATURE_SIZE = 2 tokens from the encoder.
    crops0 = jax.random.normal(k_crops, (3, C, PATCH, 2 * PATCH), jnp.float32)
    batch_image_crops = [crops0, None]   # element 1 exercises the zero path

    out = img_obj_encoder_forward(batch, batch_image_crops, packed)
    out = jax.block_until_ready(out)

    s_img = (H // PATCH) * (W // PATCH)
    assert out.shape == (B, s_img + TOP_N_BBOX * HARD_IMG_FEATURE_SIZE, D_VIS), out.shape

    # Correctness check against a pure-JAX f32 reference of the same forward.
    ref_img = _encoder_ref(batch, params)                            # (B, 4, 32)
    ref_c0 = _encoder_ref(crops0, params).reshape(-1, D_VIS)         # (6, 32)
    ref_c0 = jnp.concatenate([jnp.zeros((2, D_VIS), jnp.float32), ref_c0], axis=0)
    ref_c1 = jnp.zeros((TOP_N_BBOX * HARD_IMG_FEATURE_SIZE, D_VIS), jnp.float32)
    ref = jnp.concatenate([ref_img, jnp.stack([ref_c0, ref_c1], axis=0)], axis=1)

    out_f32 = out.astype(jnp.float32)
    max_err = float(jnp.max(jnp.abs(out_f32 - ref)))
    # bf16 matmul operands + bf16 output -> loose tolerance.
    assert jnp.allclose(out_f32, ref, atol=5e-2, rtol=5e-2), max_err

    print("KERNEL_OK")
</pallas_src>

<mosaic_0001>
module attributes {stable_mosaic.version = 11 : i64} {
  func.func @_patch_embed_ln_kernel(%arg0: i32, %arg1: i32, %arg2: memref<1x16x256xbf16, #tpu.memory_space<vmem>>, %arg3: memref<256x128xbf16, #tpu.memory_space<vmem>>, %arg4: memref<8x128xf32, #tpu.memory_space<vmem>>, %arg5: memref<1x16x1xf32, #tpu.memory_space<vmem>>, %arg6: memref<1x16x128xbf16, #tpu.memory_space<vmem>>) attributes {dimension_semantics = [#tpu.dimension_semantics<parallel>, #tpu.dimension_semantics<parallel>], iteration_bounds = array<i64: 2, 1>, scalar_prefetch = 0 : i64, scratch_operands = 0 : i64, tpu.core_type = #tpu.core_type<tc>, window_params = [{transform_indices = @transform_0, window_bounds = array<i64: 1, 16, 256>}, {pipeline_mode = #tpu.pipeline_mode<synchronous>, transform_indices = @transform_1, window_bounds = array<i64: 256, 128>}, {pipeline_mode = #tpu.pipeline_mode<synchronous>, transform_indices = @transform_2, window_bounds = array<i64: 8, 128>}, {transform_indices = @transform_3, window_bounds = array<i64: 1, 16, 1>}, {transform_indices = @transform_4, window_bounds = array<i64: 1, 16, 128>}]} {
    %c0 = arith.constant 0 : index
    %c0_0 = arith.constant 0 : index
    %c0_1 = arith.constant 0 : index
    %0 = vector.load %arg2[%c0, %c0_0, %c0_1] : memref<1x16x256xbf16, #tpu.memory_space<vmem>>, vector<1x16x256xbf16>
    %1 = vector.shape_cast %0 : vector<1x16x256xbf16> to vector<16x256xbf16>
    %c0_2 = arith.constant 0 : index
    %c0_3 = arith.constant 0 : index
    %2 = vector.load %arg3[%c0_2, %c0_3] : memref<256x128xbf16, #tpu.memory_space<vmem>>, vector<256x128xbf16>
    %cst = arith.constant dense<0.000000e+00> : vector<16x128xf32>
    %3 = tpu.matmul %1, %2, %cst {dimension_numbers = #tpu.dot_dimension_numbers<[1], [0], [0], [1], [0, 0, 1, 1], [], []>} : vector<16x256xbf16>, vector<256x128xbf16>, vector<16x128xf32> -> vector<16x128xf32>
    %c0_4 = arith.constant 0 : index
    %c0_5 = arith.constant 0 : index
    %4 = vector.load %arg4[%c0_4, %c0_5] : memref<8x128xf32, #tpu.memory_space<vmem>>, vector<8x128xf32>
    %5 = vector.extract_strided_slice %4 {offsets = [0, 0], sizes = [1, 128], strides = [1, 1]} : vector<8x128xf32> to vector<1x128xf32>
    %6 = vector.broadcast %5 : vector<1x128xf32> to vector<16x128xf32>
    %7 = arith.addf %3, %6 : vector<16x128xf32>
    %cst_6 = arith.constant dense<0.000000e+00> : vector<16xf32>
    %8 = vector.multi_reduction <add>, %7, %cst_6 [1] : vector<16x128xf32> to vector<16xf32>
    %9 = vector.shape_cast %8 : vector<16xf32> to vector<16x1xf32>
    %cst_7 = arith.constant 3.125000e-02 : f32
    %10 = vector.broadcast %cst_7 : f32 to vector<16x1xf32>
    %11 = arith.mulf %9, %10 : vector<16x1xf32>
    %12 = arith.mulf %7, %7 : vector<16x128xf32>
    %cst_8 = arith.constant dense<0.000000e+00> : vector<16xf32>
    %13 = vector.multi_reduction <add>, %12, %cst_8 [1] : vector<16x128xf32> to vector<16xf32>
    %14 = vector.shape_cast %13 : vector<16xf32> to vector<16x1xf32>
    %cst_9 = arith.constant 3.125000e-02 : f32
    %15 = vector.broadcast %cst_9 : f32 to vector<16x1xf32>
    %16 = arith.mulf %14, %15 : vector<16x1xf32>
    %17 = arith.mulf %11, %11 : vector<16x1xf32>
    %18 = arith.subf %16, %17 : vector<16x1xf32>
    %cst_10 = arith.constant 0.000000e+00 : f32
    %19 = vector.broadcast %cst_10 : f32 to vector<16x1xf32>
    %20 = arith.maximumf %18, %19 : vector<16x1xf32>
    %21 = vector.broadcast %11 : vector<16x1xf32> to vector<16x128xf32>
    %22 = arith.subf %7, %21 : vector<16x128xf32>
    %cst_11 = arith.constant 9.99999974E-6 : f32
    %23 = vector.broadcast %cst_11 : f32 to vector<16x1xf32>
    %24 = arith.addf %20, %23 : vector<16x1xf32>
    %25 = math.rsqrt %24 : vector<16x1xf32>
    %26 = vector.broadcast %25 : vector<16x1xf32> to vector<16x128xf32>
    %27 = arith.mulf %22, %26 : vector<16x128xf32>
    %28 = vector.extract_strided_slice %4 {offsets = [1, 0], sizes = [1, 128], strides = [1, 1]} : vector<8x128xf32> to vector<1x128xf32>
    %29 = vector.broadcast %28 : vector<1x128xf32> to vector<16x128xf32>
    %30 = arith.mulf %27, %29 : vector<16x128xf32>
    %31 = vector.extract_strided_slice %4 {offsets = [2, 0], sizes = [1, 128], strides = [1, 1]} : vector<8x128xf32> to vector<1x128xf32>
    %32 = vector.broadcast %31 : vector<1x128xf32> to vector<16x128xf32>
    %33 = arith.addf %30, %32 : vector<16x128xf32>
    %c0_12 = arith.constant 0 : index
    %c0_13 = arith.constant 0 : index
    %c0_14 = arith.constant 0 : index
    %34 = vector.load %arg5[%c0_12, %c0_13, %c0_14] : memref<1x16x1xf32, #tpu.memory_space<vmem>>, vector<1x16x1xf32>
    %35 = vector.shape_cast %34 : vector<1x16x1xf32> to vector<16x1xf32>
    %36 = vector.broadcast %35 : vector<16x1xf32> to vector<16x128xf32>
    %37 = arith.mulf %33, %36 : vector<16x128xf32>
    %38 = arith.truncf %37 : vector<16x128xf32> to vector<16x128xbf16>
    %c0_15 = arith.constant 0 : index
    %c0_16 = arith.constant 0 : index
    %c0_17 = arith.constant 0 : index
    %39 = vector.load %arg6[%c0_15, %c0_16, %c0_17] : memref<1x16x128xbf16, #tpu.memory_space<vmem>>, vector<1x16x128xbf16>
    %40 = vector.shape_cast %39 : vector<1x16x128xbf16> to vector<16x128xbf16>
    %41 = vector.shape_cast %38 : vector<16x128xbf16> to vector<1x16x128xbf16>
    tpu.vector_store %arg6[%c0_15, %c0_16, %c0_17], %41 {strides = array<i32>} : memref<1x16x128xbf16, #tpu.memory_space<vmem>>, vector<1x16x128xbf16>,
    return
  }
  func.func @transform_0(%arg0: i32, %arg1: i32) -> (i32, i32, i32) {
    %c0_i32 = arith.constant 0 : i32
    %c0_i32_0 = arith.constant 0 : i32
    return %arg0, %arg1, %c0_i32 : i32, i32, i32
  }
  func.func @transform_1(%arg0: i32, %arg1: i32) -> (i32, i32) {
    %c0_i32 = arith.constant 0 : i32
    %c0_i32_0 = arith.constant 0 : i32
    %c0_i32_1 = arith.constant 0 : i32
    return %c0_i32, %c0_i32_0 : i32, i32
  }
  func.func @transform_2(%arg0: i32, %arg1: i32) -> (i32, i32) {
    %c0_i32 = arith.constant 0 : i32
    %c0_i32_0 = arith.constant 0 : i32
    %c0_i32_1 = arith.constant 0 : i32
    return %c0_i32, %c0_i32_0 : i32, i32
  }
  func.func @transform_3(%arg0: i32, %arg1: i32) -> (i32, i32, i32) {
    %c0_i32 = arith.constant 0 : i32
    %c0_i32_0 = arith.constant 0 : i32
    return %arg0, %arg1, %c0_i32 : i32, i32, i32
  }
  func.func @transform_4(%arg0: i32, %arg1: i32) -> (i32, i32, i32) {
    %c0_i32 = arith.constant 0 : i32
    %c0_i32_0 = arith.constant 0 : i32
    return %arg0, %arg1, %c0_i32 : i32, i32, i32
  }
}

</mosaic_0001>

<llo_original>
// kernel: tpu_custom_call.1
$region0: #{tpu_custom_call.1}
  #allocation0 [shape = 'u32[]', space=smem, size = 0x4, offset = 0x4, fixed_abs, tag = 'smem constant byte address 0x4 - core index']
  #allocation1 [shape = 'u32[144,128]{1,0:T(1,128)}', space=vmem, size = 0x12000, scoped, tag = 'internal scratch']
  %s0 = inlined_call_operand.vmem [shape: bf16[2,16,256], index: 0, kind: input, shape index: {}]
  %s1 = inlined_call_operand.hbm [shape: bf16[256,128], index: 1, kind: input, shape index: {}]
  %s2 = inlined_call_operand.vmem [shape: f32[8,128], index: 2, kind: input, shape index: {}]
  %s3 = inlined_call_operand.vmem [shape: f32[2,16,1], index: 3, kind: input, shape index: {}]
  %s4 = inlined_call_operand.hbm [shape: bf16[2,16,128], index: 4, kind: output, shape index: {}]
  %s5 = sld [smem:[#allocation0]]
  $region53: #{tpu_custom_call.1} parent=0
    _
  %s7 = ssub.s32 1, %s5
  %s8 = scalar_select 0, %s7, %s5
  $region1: #{tpu_custom_call.1} parent=0
    #allocation2 [shape = 'u8[65536]{0}', space=vmem, size = 0x10000, scoped, tag = 'input window, operand 1, single buffered']
    #allocation3 [shape = 's32[2]{0}', space=sflag, size = 0x8, scoped, tag = 'scoped memory for tpu_custom_call.1']
    #allocation4 [shape = 's32[2]{0}', space=sflag, size = 0x8, scoped, tag = 'scoped memory for tpu_custom_call.1']
    #allocation5 [shape = 'u8[8192]{0}', space=vmem, size = 0x2000, scoped, tag = 'output window, operand 0']
    %9 = vsyncpa [#allocation3], 0
    %10 = vsyncpa [#allocation4], 0
    %s11 = scalar_lea.sflag [#allocation4], 1
    %12 = vsyncpa %s11, 0
    loop: start=0, step=1, limit=4
    $region2: #{tpu_custom_call.1} parent=1 // loop_pre_header
      _
    $region3: #{tpu_custom_call.1} parent=1 // loop_header
      %s14 = sphi 0, %s18
      %p15 = scmp.ge.s32.totalorder %s14, 4
      %s21 = sphi 0, %s33
      %s22 = sphi 0, %s29
      %s23 = sphi 0, %s21
      %s24 = sphi 0, %s22
      %s25 = sphi 0, %s23
      %s26 = sphi 0, %s24
      %s38 = sphi 0, %s40
      %s41 = sphi 0, %s38
      %s42 = sphi 0, %s41
      %s58 = sphi 0, %s42
      %s62 = sphi 0, %s62
      %s64 = sphi 0, %s62
      %s65 = sphi 0, %s64
      %s79 = sphi 0, %s65
      %s83 = sphi 0, %s83
      %s85 = sphi 0, %s83
      %s86 = sphi 0, %s85
      %s100 = sphi 0, %s86
      %s108 = sphi 0, %s110
      %s111 = sphi 0, %s108
      %s112 = sphi 0, %s111
      %s128 = sphi 0, %s112
      %s136 = sphi 0, %s138
      %s139 = sphi 0, %s136
      %s140 = sphi 0, %s139
      %s156 = sphi 0, %s140
    $region4: #{tpu_custom_call.1} parent=1 // loop_header_branch
      %17 = sbr.rel (%p15) target = $region8
    $region5: #{tpu_custom_call.1} parent=1 // loop_body
      %s19 = ssub.s32 %s14, 1
      %s20 = ssub.s32 %s14, 2
      %s27 = sadd.s32 1, %s22
      %p28 = scmp.ge.s32.totalorder %s27, 1
      %s29 = scalar_select %p28, 0, %s27
      %s30 = sadd.s32 1, %s21
      %s31 = scalar_select %p28, %s30, %s21
      %p32 = scmp.ge.s32.totalorder %s31, 2
      %s33 = scalar_select %p32, 0, %s31
      %s34 = ssub.s32 %s21, %s33
      %s35 = ssub.s32 %s22, %s29
      %s36 = sor.u32 %s34, %s35
      %p37 = scmp.eq.s32.totalorder %s36, 0
      %s39 = sadd.s32 %s38, 1
      %s40 = scalar_select %p37, %s38, %s39
      %p43 = pneg %p37
      %p44 = scmp.eq.s32.totalorder %s14, 1
      %p45 = por %p43, %p44
      %p46 = scmp.ne.s32.totalorder %s38, %s41
      %p47 = scmp.eq.s32.totalorder %s14, 0
      %p48 = por %p46, %p47
      %p49 = scmp.ne.s32.totalorder %s38, %s41
      %p50 = scmp.eq.s32.totalorder %s19, 1
      %p51 = por %p49, %p50
      %p52 = scmp.ne.s32.totalorder %s41, %s42
      %p53 = scmp.eq.s32.totalorder %s19, 0
      %p54 = por %p52, %p53
      %p55 = scmp.ne.s32.totalorder %s41, %s42
      %p56 = scmp.eq.s32.totalorder %s20, 1
      %p57 = por %p55, %p56
      %p59 = scmp.ne.s32.totalorder %s42, %s58
      %p60 = scmp.eq.s32.totalorder %s20, 0
      %p61 = por %p59, %p60
      %s63 = sadd.s32 %s62, 1
      %p66 = scmp.eq.s32.totalorder %s14, 1
      %p67 = scmp.ne.s32.totalorder %s62, %s64
      %p68 = scmp.eq.s32.totalorder %s14, 0
      %p69 = por %p67, %p68
      %p70 = scmp.ne.s32.totalorder %s62, %s64
      %p71 = scmp.eq.s32.totalorder %s19, 1
      %p72 = por %p70, %p71
      %p73 = scmp.ne.s32.totalorder %s64, %s65
      %p74 = scmp.eq.s32.totalorder %s19, 0
      %p75 = por %p73, %p74
      %p76 = scmp.ne.s32.totalorder %s64, %s65
      %p77 = scmp.eq.s32.totalorder %s20, 1
      %p78 = por %p76, %p77
      %p80 = scmp.ne.s32.totalorder %s65, %s79
      %p81 = scmp.eq.s32.totalorder %s20, 0
      %p82 = por %p80, %p81
      %s84 = sadd.s32 %s83, 1
      %p87 = scmp.eq.s32.totalorder %s14, 1
      %p88 = scmp.ne.s32.totalorder %s83, %s85
      %p89 = scmp.eq.s32.totalorder %s14, 0
      %p90 = por %p88, %p89
      %p91 = scmp.ne.s32.totalorder %s83, %s85
      %p92 = scmp.eq.s32.totalorder %s19, 1
      %p93 = por %p91, %p92
      %p94 = scmp.ne.s32.totalorder %s85, %s86
      %p95 = scmp.eq.s32.totalorder %s19, 0
      %p96 = por %p94, %p95
      %p97 = scmp.ne.s32.totalorder %s85, %s86
      %p98 = scmp.eq.s32.totalorder %s20, 1
      %p99 = por %p97, %p98
      %p101 = scmp.ne.s32.totalorder %s86, %s100
      %p102 = scmp.eq.s32.totalorder %s20, 0
      %p103 = por %p101, %p102
      %s104 = ssub.s32 %s21, %s33
      %s105 = ssub.s32 %s22, %s29
      %s106 = sor.u32 %s104, %s105
      %p107 = scmp.eq.s32.totalorder %s106, 0
      %s109 = sadd.s32 %s108, 1
      %s110 = scalar_select %p107, %s108, %s109
      %p113 = pneg %p107
      %p114 = scmp.eq.s32.totalorder %s14, 1
      %p115 = por %p113, %p114
      %p116 = scmp.ne.s32.totalorder %s108, %s111
      %p117 = scmp.eq.s32.totalorder %s14, 0
      %p118 = por %p116, %p117
      %p119 = scmp.ne.s32.totalorder %s108, %s111
      %p120 = scmp.eq.s32.totalorder %s19, 1
      %p121 = por %p119, %p120
      %p122 = scmp.ne.s32.totalorder %s111, %s112
      %p123 = scmp.eq.s32.totalorder %s19, 0
      %p124 = por %p122, %p123
      %p125 = scmp.ne.s32.totalorder %s111, %s112
      %p126 = scmp.eq.s32.totalorder %s20, 1
      %p127 = por %p125, %p126
      %p129 = scmp.ne.s32.totalorder %s112, %s128
      %p130 = scmp.eq.s32.totalorder %s20, 0
      %p131 = por %p129, %p130
      %s132 = ssub.s32 %s21, %s33
      %s133 = ssub.s32 %s22, %s29
      %s134 = sor.u32 %s132, %s133
      %p135 = scmp.eq.s32.totalorder %s134, 0
      %s137 = sadd.s32 %s136, 1
      %s138 = scalar_select %p135, %s136, %s137
      %p141 = pneg %p135
      %p142 = scmp.eq.s32.totalorder %s14, 1
      %p143 = por %p141, %p142
      %p144 = scmp.ne.s32.totalorder %s136, %s139
      %p145 = scmp.eq.s32.totalorder %s14, 0
      %p146 = por %p144, %p145
      %p147 = scmp.ne.s32.totalorder %s136, %s139
      %p148 = scmp.eq.s32.totalorder %s19, 1
      %p149 = por %p147, %p148
      %p150 = scmp.ne.s32.totalorder %s139, %s140
      %p151 = scmp.eq.s32.totalorder %s19, 0
      %p152 = por %p150, %p151
      %p153 = scmp.ne.s32.totalorder %s139, %s140
      %p154 = scmp.eq.s32.totalorder %s20, 1
      %p155 = por %p153, %p154
      %p157 = scmp.ne.s32.totalorder %s140, %s156
      %p158 = scmp.eq.s32.totalorder %s20, 0
      %p159 = por %p157, %p158
      %p160 = scmp.le.s32.totalorder 1, %s14
      %p161 = scmp.lt.s32.totalorder %s14, 3
      %p162 = pnand %p160, %p161
      %p163 = pneg %p162
      // Predicated region
      $region9: #{tpu_custom_call.1} parent=5 // pred_check
        _
      $region10: #{tpu_custom_call.1} parent=5 // pred_check_branch
        %165 = sbr.rel (%p162) target = $region12
      $region11: #{tpu_custom_call.1} parent=5 // pred_region
        %s166 = ssub.s32 %s14, 1
        // Predicated region
        $region13: #{tpu_custom_call.1} parent=11 // pred_check
          %p167 = pneg %p75
        $region14: #{tpu_custom_call.1} parent=11 // pred_check_branch
          %169 = sbr.rel (%p167) target = $region16
        $region15: #{tpu_custom_call.1} parent=11 // pred_region
          %s171 = ssub.s32 2048, 2048
          %172 = vsyncadd [#allocation3], %s171
          %s173 = sshll.u32 [#allocation2], 4
          %s174 = int_to_ptr.vmem [resolvable:$true] %s173
          %179 = dma.hbm_to_vmem [thread:$0]  %s1, 2048, %s174, [#allocation3], 64, 64, 4
        $region16: #{tpu_custom_call.1} parent=11 // pred_fallthru
          _
        // Predicated region
        $region17: #{tpu_custom_call.1} parent=11 // pred_check
          %p180 = pneg %p96
        $region18: #{tpu_custom_call.1} parent=11 // pred_check_branch
          %182 = sbr.rel (%p180) target = $region20
        $region19: #{tpu_custom_call.1} parent=11 // pred_region
          _
        $region20: #{tpu_custom_call.1} parent=11 // pred_fallthru
          _
      $region12: #{tpu_custom_call.1} parent=5 // pred_fallthru
        _
      %p183 = scmp.lt.s32.totalorder %s14, 2
      // Predicated region
      $region21: #{tpu_custom_call.1} parent=5 // pred_check
        %p184 = pneg %p183
      $region22: #{tpu_custom_call.1} parent=5 // pred_check_branch
        %186 = sbr.rel (%p184) target = $region24
      $region23: #{tpu_custom_call.1} parent=5 // pred_region
        // Predicated region
        $region25: #{tpu_custom_call.1} parent=23 // pred_check
          %p187 = pneg %p48
        $region26: #{tpu_custom_call.1} parent=23 // pred_check_branch
          %189 = sbr.rel (%p187) target = $region28
        $region27: #{tpu_custom_call.1} parent=23 // pred_region
          %s190 = smul.u32 2, %s22
          %p191 = scmp.lt.s32.totalorder %s21, 1
          %s192 = scalar_select %p191, %s21, 1
          %p193 = scmp.lt.s32.totalorder %s190, 1
          %s194 = scalar_select %p193, %s190, 1
          %s195 = smul.addr %s194, 2
          %s196 = smul.addr %s192, 4
          %s197 = sadd.s32 %s195, %s196
          %s198 = smul.addr %s197, 4
          %s199 = scalar_lea.vmem %s0, %s198
          %s200 = smul.u32 2, %s22
        $region28: #{tpu_custom_call.1} parent=23 // pred_fallthru
          _
        // Predicated region
        $region29: #{tpu_custom_call.1} parent=23 // pred_check
          %p201 = pneg %p118
        $region30: #{tpu_custom_call.1} parent=23 // pred_check_branch
          %203 = sbr.rel (%p201) target = $region32
        $region31: #{tpu_custom_call.1} parent=23 // pred_region
          %s204 = smul.u32 2, %s22
          %p205 = scmp.lt.s32.totalorder %s21, 1
          %s206 = scalar_select %p205, %s21, 1
          %p207 = scmp.lt.s32.totalorder %s204, 1
          %s208 = scalar_select %p207, %s204, 1
          %s209 = smul.addr %s206, 2
          %s210 = sadd.s32 %s208, %s209
          %s211 = smul.addr %s210, 8
          %s212 = scalar_lea.vmem %s3, %s211
          %s213 = smul.u32 2, %s22
        $region32: #{tpu_custom_call.1} parent=23 // pred_fallthru
          _
      $region24: #{tpu_custom_call.1} parent=5 // pred_fallthru
        _
      %p214 = scmp.le.s32.totalorder 1, %s14
      %p215 = scmp.lt.s32.totalorder %s14, 3
      %p216 = pnand %p214, %p215
      %p217 = pneg %p216
      // Predicated region
      $region33: #{tpu_custom_call.1} parent=5 // pred_check
        _
      $region34: #{tpu_custom_call.1} parent=5 // pred_check_branch
        %219 = sbr.rel (%p216) target = $region36
      $region35: #{tpu_custom_call.1} parent=5 // pred_region
        %s220 = ssub.s32 %s14, 1
        // Predicated region
        $region37: #{tpu_custom_call.1} parent=35 // pred_check
          %p221 = pneg %p75
        $region38: #{tpu_custom_call.1} parent=35 // pred_check_branch
          %223 = sbr.rel (%p221) target = $region40
        $region39: #{tpu_custom_call.1} parent=35 // pred_region
          %224 = dma.done [#allocation3], 2048
        $region40: #{tpu_custom_call.1} parent=35 // pred_fallthru
          _
        %s225 = smul.u32 2, %s24
        %p226 = scmp.lt.s32.totalorder %s23, 1
        %s227 = scalar_select %p226, %s23, 1
        %p228 = scmp.lt.s32.totalorder %s225, 1
        %s229 = scalar_select %p228, %s225, 1
        %s230 = smul.addr %s229, 2
        %s231 = smul.addr %s227, 4
        %s232 = sadd.s32 %s230, %s231
        %s233 = smul.addr %s232, 4
        %s234 = scalar_lea.vmem %s0, %s233
        %p235 = pneg %p54
        %p236 = pneg %p51
        %p237 = pneg %p75
        %p238 = pneg %p72
        %p239 = pneg %p96
        %p240 = pneg %p93
        %s241 = smul.u32 2, %s24
        %p242 = scmp.lt.s32.totalorder %s23, 1
        %s243 = scalar_select %p242, %s23, 1
        %p244 = scmp.lt.s32.totalorder %s241, 1
        %s245 = scalar_select %p244, %s241, 1
        %s246 = smul.addr %s243, 2
        %s247 = sadd.s32 %s245, %s246
        %s248 = smul.addr %s247, 8
        %s249 = scalar_lea.vmem %s3, %s248
        %p250 = pneg %p124
        %p251 = pneg %p121
        %p252 = pneg %p152
        %p253 = pneg %p149
        %s254 = sand.u32 %s139, 1
        %s255 = scalar_lea.sflag [#allocation4], %s254
        %s256 = sand.u32 %s139, 1
        %s257 = smul.addr %s256, 8
        %s258 = scalar_lea.vmem [#allocation5], %s257
        %s259 = smul.u32 2, %s24
        %p260 = scmp.lt.s32.totalorder %s23, 1
        %s261 = scalar_select %p260, %s23, 1
        %p262 = scmp.lt.s32.totalorder %s259, 1
        %s263 = scalar_select %p262, %s259, 1
        %s264 = smul.addr %s263, 2
        %s265 = smul.addr %s261, 4
        %s266 = sadd.s32 %s264, %s265
        %s267 = smul.addr %s266, 4
        %s268 = scalar_lea.vmem %s0, %s267
        %s269 = smul.u32 2, %s24
        %s270 = smul.u32 2, %s24
        %p271 = scmp.lt.s32.totalorder %s23, 1
        %s272 = scalar_select %p271, %s23, 1
        %p273 = scmp.lt.s32.totalorder %s270, 1
        %s274 = scalar_select %p273, %s270, 1
        %s275 = smul.addr %s272, 2
        %s276 = sadd.s32 %s274, %s275
        %s277 = smul.addr %s276, 8
        %s278 = scalar_lea.vmem %s3, %s277
        %s279 = smul.u32 2, %s24
        %s280 = smul.u32 2, %s24
        %v282 = vld [vmem:[%s268] sm:$0xff]
        %v283 = vld [vmem:[%s268 + $0x8] sm:$0xff]
        %v284 = vld [vmem:[#allocation2] sm:$0xf]
        %v285 = vld [vmem:[#allocation2 + $0x4] sm:$0xf]
        %v286 = vld [vmem:[#allocation2 + $0x8] sm:$0xf]
        %v287 = vld [vmem:[#allocation2 + $0xc] sm:$0xf]
        %v288 = vld [vmem:[#allocation2 + $0x10] sm:$0xf]
        %v289 = vld [vmem:[#allocation2 + $0x14] sm:$0xf]
        %v290 = vld [vmem:[#allocation2 + $0x18] sm:$0xf]
        %v291 = vld [vmem:[#allocation2 + $0x1c] sm:$0xf]
        %v292 = vld [vmem:[#allocation2 + $0x20] sm:$0xf]
        %v293 = vld [vmem:[#allocation2 + $0x24] sm:$0xf]
        %v294 = vld [vmem:[#allocation2 + $0x28] sm:$0xf]
        %v295 = vld [vmem:[#allocation2 + $0x2c] sm:$0xf]
        %v296 = vld [vmem:[#allocation2 + $0x30] sm:$0xf]
        %v297 = vld [vmem:[#allocation2 + $0x34] sm:$0xf]
        %v298 = vld [vmem:[#allocation2 + $0x38] sm:$0xf]
        %v299 = vld [vmem:[#allocation2 + $0x3c] sm:$0xf]
        %v300 = vld [vmem:[#allocation2 + $0x40] sm:$0xf]
        %v301 = vld [vmem:[#allocation2 + $0x44] sm:$0xf]
        %v302 = vld [vmem:[#allocation2 + $0x48] sm:$0xf]
        %v303 = vld [vmem:[#allocation2 + $0x4c] sm:$0xf]
        %v304 = vld [vmem:[#allocation2 + $0x50] sm:$0xf]
        %v305 = vld [vmem:[#allocation2 + $0x54] sm:$0xf]
        %v306 = vld [vmem:[#allocation2 + $0x58] sm:$0xf]
        %v307 = vld [vmem:[#allocation2 + $0x5c] sm:$0xf]
        %v308 = vld [vmem:[#allocation2 + $0x60] sm:$0xf]
        %v309 = vld [vmem:[#allocation2 + $0x64] sm:$0xf]
        %v310 = vld [vmem:[#allocation2 + $0x68] sm:$0xf]
        %v311 = vld [vmem:[#allocation2 + $0x6c] sm:$0xf]
        %v312 = vld [vmem:[#allocation2 + $0x70] sm:$0xf]
        %v313 = vld [vmem:[#allocation2 + $0x74] sm:$0xf]
        %v314 = vld [vmem:[#allocation2 + $0x78] sm:$0xf]
        %v315 = vld [vmem:[#allocation2 + $0x7c] sm:$0xf]
        %v316 = vld [vmem:[%s2] sm:$0xff]
        %v317 = vlaneseq
        %v318 = vshrl.u32 %v317, 7
        %v319 = vsub.s32 0, %v318
        %v320 = vrot.slane %v316, %v319
        %v323 = vunpack.c.l.b16 %v282
        %v324 = vunpack.c.h.b16 %v282
        %v325 = vunpack.c.l.b16 %v283
        %v326 = vunpack.c.h.b16 %v283
        %v327 = vpack.c.b16 %v325, %v323
        %v328 = vpack.c.b16 %v326, %v324
        %v363 = vunpack.c.l.b16 %v284
        %v364 = vunpack.c.l.b16 %v285
        %v365 = vunpack.c.l.b16 %v286
        %v366 = vunpack.c.l.b16 %v287
        %v367 = vunpack.c.l.b16 %v288
        %v368 = vunpack.c.l.b16 %v289
        %v369 = vunpack.c.l.b16 %v290
        %v370 = vunpack.c.l.b16 %v291
        %v371 = vunpack.c.l.b16 %v292
        %v372 = vunpack.c.l.b16 %v293
        %v373 = vunpack.c.l.b16 %v294
        %v374 = vunpack.c.l.b16 %v295
        %v375 = vunpack.c.l.b16 %v296
        %v376 = vunpack.c.l.b16 %v297
        %v377 = vunpack.c.l.b16 %v298
        %v378 = vunpack.c.l.b16 %v299
        %v379 = vunpack.c.l.b16 %v300
        %v380 = vunpack.c.l.b16 %v301
        %v381 = vunpack.c.l.b16 %v302
        %v382 = vunpack.c.l.b16 %v303
        %v383 = vunpack.c.l.b16 %v304
        %v384 = vunpack.c.l.b16 %v305
        %v385 = vunpack.c.l.b16 %v306
        %v386 = vunpack.c.l.b16 %v307
        %v387 = vunpack.c.l.b16 %v308
        %v388 = vunpack.c.l.b16 %v309
        %v389 = vunpack.c.l.b16 %v310
        %v390 = vunpack.c.l.b16 %v311
        %v391 = vunpack.c.l.b16 %v312
        %v392 = vunpack.c.l.b16 %v313
        %v393 = vunpack.c.l.b16 %v314
        %v394 = vunpack.c.l.b16 %v315
        %v395 = vpack.c.b16 %v364, %v363
        %v396 = vpack.c.b16 %v366, %v365
        %v397 = vpack.c.b16 %v368, %v367
        %v398 = vpack.c.b16 %v370, %v369
        %v399 = vpack.c.b16 %v372, %v371
        %v400 = vpack.c.b16 %v374, %v373
        %v401 = vpack.c.b16 %v376, %v375
        %v402 = vpack.c.b16 %v378, %v377
        %v403 = vpack.c.b16 %v380, %v379
        %v404 = vpack.c.b16 %v382, %v381
        %v405 = vpack.c.b16 %v384, %v383
        %v406 = vpack.c.b16 %v386, %v385
        %v407 = vpack.c.b16 %v388, %v387
        %v408 = vpack.c.b16 %v390, %v389
        %v409 = vpack.c.b16 %v392, %v391
        %v410 = vpack.c.b16 %v394, %v393
        %427 = vmatprep.subr.bf16.mxu0 0
        %428 = vmatpush1.bf16.msra.mxu0 %v395
        %429 = vmatprep.subr.bf16.mxu0 0
        %430 = vmatpush1.bf16.msra.mxu0 %v396
        %431 = vmatprep.subr.bf16.mxu0 0
        %432 = vmatpush1.bf16.msra.mxu0 %v397
        %433 = vmatprep.subr.bf16.mxu0 0
        %434 = vmatpush1.bf16.msra.mxu0 %v398
        %435 = vmatprep.subr.bf16.mxu0 0
        %436 = vmatpush1.bf16.msra.mxu0 %v399
        %437 = vmatprep.subr.bf16.mxu0 0
        %438 = vmatpush1.bf16.msra.mxu0 %v400
        %439 = vmatprep.subr.bf16.mxu0 0
        %440 = vmatpush1.bf16.msra.mxu0 %v401
        %441 = vmatprep.subr.bf16.mxu0 0
        %442 = vmatpush1.bf16.msra.mxu0 %v402
        %443 = vmatprep.subr.bf16.mxu0 0
        %444 = vmatpush1.bf16.msra.mxu0 %v403
        %445 = vmatprep.subr.bf16.mxu0 0
        %446 = vmatpush1.bf16.msra.mxu0 %v404
        %447 = vmatprep.subr.bf16.mxu0 0
        %448 = vmatpush1.bf16.msra.mxu0 %v405
        %449 = vmatprep.subr.bf16.mxu0 0
        %450 = vmatpush1.bf16.msra.mxu0 %v406
        %451 = vmatprep.subr.bf16.mxu0 0
        %452 = vmatpush1.bf16.msra.mxu0 %v407
        %453 = vmatprep.subr.bf16.mxu0 0
        %454 = vmatpush1.bf16.msra.mxu0 %v408
        %455 = vmatprep.subr.bf16.mxu0 0
        %456 = vmatpush1.bf16.msra.mxu0 %v409
        %457 = vmatprep.subr.bf16.mxu0 0
        %458 = vmatpush1.bf16.msra.mxu0 %v410
        %459 = vmatprep.mubr.bf16.mxu0 %v328
        %460 = vmatmul.mubr.bf16.gmra.mrb[0].mxu0 %v327
        %v461 = vpop.f32.mrb[0].mxu0
        %v462 = vadd.f32 %v320, %v461
        %v463 = vpop.f32.mrb[0].mxu0
        %v464 = vpop.f32.mrb[0].mxu0
        %v465 = vadd.f32 %v320, %v464
        %v466 = vpop.f32.mrb[0].mxu0
        %467 = vdwg.mxu0
        %468 = vadd.xlane.f32.xlu0 %v462
        %v469 = vpop.xlane.xlu0 %468
        %470 = vadd.xlane.f32.xlu0 %v465
        %v471 = vpop.xlane.xlu0 %470
        %v472 = vmul.f32 %v469, 0.03125
        %v473 = vmul.f32 %v471, 0.03125
        %v474 = vmul.f32 %v462, %v462
        %v475 = vmul.f32 %v465, %v465
        %476 = vadd.xlane.f32.xlu0 %v474
        %v477 = vpop.xlane.xlu0 %476
        %478 = vadd.xlane.f32.xlu0 %v475
        %v479 = vpop.xlane.xlu0 %478
        %v480 = vmul.f32 %v477, 0.03125
        %v481 = vmul.f32 %v479, 0.03125
        %v482 = vmul.f32 %v472, %v472
        %v483 = vmul.f32 %v473, %v473
        %v484 = vsub.f32 %v480, %v482
        %v485 = vsub.f32 %v481, %v483
        %v486 = vmax.f32 %v484, 0.0
        %v487 = vmax.f32 %v485, 0.0
        %v488 = vsub.f32 %v462, %v472
        %v489 = vsub.f32 %v465, %v473
        %v490 = vadd.f32 %v486, 1e-05
        %v491 = vadd.f32 %v487, 1e-05
        %v492 = vrsqrt.pop %v490
        %v493 = vrsqrt.pop %v491
        %v494 = vmul.f32 %v488, %v492
        %v495 = vmul.f32 %v489, %v493
        %v496 = vlaneseq
        %v497 = vshrl.u32 %v496, 7
        %v498 = vsub.s32 1, %v497
        %v499 = vrot.slane %v316, %v498
        %v500 = vmul.f32 %v494, %v499
        %v501 = vmul.f32 %v495, %v499
        %v502 = vlaneseq
        %v503 = vshrl.u32 %v502, 7
        %v504 = vsub.s32 2, %v503
        %v505 = vrot.slane %v316, %v504
        %v506 = vadd.f32 %v500, %v505
        %v507 = vadd.f32 %v501, %v505
        %v508 = vld [vmem:[%s278] sm:$0xff]
        %v509 = vld [vmem:[%s278 + $0x8] sm:$0xff]
        %511 = vset.pattern.permute.xlu0 0
        %512 = vperm.xlu0 %511, %v508
        %v513 = vpop.permute.xlu0 %512
        %516 = vset.pattern.permute.xlu0 0
        %517 = vperm.xlu0 %516, %v509
        %v518 = vpop.permute.xlu0 %517
        %v520 = vmul.f32 %v506, %v513
        %v521 = vmul.f32 %v507, %v518
        %v522 = vpack.c.bf16 %v521, %v520
        %v524 = vunpack.c.l.b16 %v522
        %v525 = vunpack.c.h.b16 %v522
        %v526 = vpack.c.b16 %v524, %v524
        %v527 = vpack.c.b16 %v525, %v525
        %530 = vst [vmem:[%s258] sm:$0xf] %v526
        %531 = vst [vmem:[%s258 + $0x4] sm:$0xf] %v527
        %s532 = sand.u32 %s139, 1
        %s533 = scalar_lea.sflag [#allocation4], %s532
        %s534 = sand.u32 %s139, 1
        %s535 = smul.addr %s534, 8
        %s536 = scalar_lea.vmem [#allocation5], %s535
        // Predicated region
        $region41: #{tpu_custom_call.1} parent=35 // pred_check
          %p537 = pneg %p149
        $region42: #{tpu_custom_call.1} parent=35 // pred_check_branch
          %539 = sbr.rel (%p537) target = $region44
        $region43: #{tpu_custom_call.1} parent=35 // pred_region
          %s540 = smul.u32 2, %s24
          %s542 = ssub.s32 128, 128
          %543 = vsyncadd %s533, %s542
          %s544 = smul.addr %s23, 2
          %s545 = sadd.s32 %s540, %s544
          %s546 = smul.addr %s545, 64
          %s547 = scalar_lea.hbm %s4, %s546
          %s548 = sshll.u32 %s536, 4
          %s549 = int_to_ptr.vmem [resolvable:$true] %s548
          %554 = dma.vmem_to_hbm [thread:$0]  %s549, 128, %s547, %s533, 64, 64, 4
        $region44: #{tpu_custom_call.1} parent=35 // pred_fallthru
          _
      $region36: #{tpu_custom_call.1} parent=5 // pred_fallthru
        _
      %p555 = scmp.le.s32.totalorder 2, %s14
      // Predicated region
      $region45: #{tpu_custom_call.1} parent=5 // pred_check
        %p556 = pneg %p555
      $region46: #{tpu_custom_call.1} parent=5 // pred_check_branch
        %558 = sbr.rel (%p556) target = $region48
      $region47: #{tpu_custom_call.1} parent=5 // pred_region
        %s559 = ssub.s32 %s14, 2
        // Predicated region
        $region49: #{tpu_custom_call.1} parent=47 // pred_check
          %p560 = pneg %p155
        $region50: #{tpu_custom_call.1} parent=47 // pred_check_branch
          %562 = sbr.rel (%p560) target = $region52
        $region51: #{tpu_custom_call.1} parent=47 // pred_region
          %s563 = sand.u32 %s140, 1
          %s564 = scalar_lea.sflag [#allocation4], %s563
          %s565 = sand.u32 %s140, 1
          %s566 = smul.addr %s565, 8
          %s567 = scalar_lea.vmem [#allocation5], %s566
          %568 = dma.done %s564, 128
        $region52: #{tpu_custom_call.1} parent=47 // pred_fallthru
          _
      $region48: #{tpu_custom_call.1} parent=5 // pred_fallthru
        _
    $region6: #{tpu_custom_call.1} parent=1 // loop_footer
      %s18 = sadd.s32 1, %s14
    $region7: #{tpu_custom_call.1} parent=1 // loop_footer_branch
      %13 = sbr.rel target = $region3
    $region8: #{tpu_custom_call.1} parent=1 // loop_exit
      _
    %569 = vsyncpa [#allocation3], 1
    %s570 = scalar_lea.sflag [#allocation3], 1
    %571 = vsyncpa %s570, 1
    %572 = vsyncpa [#allocation4], 1
    %s573 = scalar_lea.sflag [#allocation4], 1
    %574 = vsyncpa %s573, 1

</llo_original>
